<compile_context>
chip_gen: v7x
topology: tpu7x:2x2x1
jax: 0.10.0
libtpu: 0.0.40
codegen_flags: <defaults>
</compile_context>

<pallas_src>
import jax
import jax.numpy as jnp
from jax import lax
from jax.experimental import pallas as pl
from jax.experimental.pallas import tpu as pltpu


def _round_up(x, m):
    return ((x + m - 1) // m) * m


def _reference(x, p):
    """Pure-JAX f32 reference of Net3.forward (eval mode), PyTorch layouts."""
    h = jnp.maximum(x @ p["w1"].T + p["b1"], 0.0)
    h = jnp.maximum(h @ p["w2"].T + p["b2"], 0.0)
    h = jnp.maximum(h @ p["w3"].T + p["b3"], 0.0)
    return jnp.maximum(h @ p["wo"].T + p["bo"], 0.0)


def net3_forward(x, params, *, tb_max=8192, min_pallas_batch=128):
    """Net3 forward (eval mode).  x: (B, n_features) f32 -> (B, 1) f32."""
    B, F = x.shape

    # Tiny batches are launch/DMA-setup bound in a kernel; fused XLA wins.
    if B < min_pallas_batch:
        return _reference(x, params)

    w1 = params["w1"].astype(jnp.float32)          # (nh1, F)
    w2 = params["w2"].astype(jnp.float32)          # (nh2, nh1)
    w3 = params["w3"].astype(jnp.float32)          # (nh3, nh2)
    wo = params["wo"].astype(jnp.float32)          # (1, nh3)
    nh1, nh2, nh3 = w1.shape[0], w2.shape[0], w3.shape[0]

    # Batch tile: multiple of 128, capped at tb_max, sized for >= `min_tiles`
    # grid steps when B allows (keeps double-buffering overlapped and gives
    # v7x's 2 TensorCores something to shard).  On v6e/v7x, tb_max up to 16384
    # is worth sweeping; 8192 keeps the v5e VMEM footprint comfortable.
    min_tiles = 4
    tb = min(tb_max, _round_up(pl.cdiv(B, min_tiles), 128))
    tb = max(128, tb - tb % 128)
    n_tiles = pl.cdiv(B, tb)

    # Pack the 8 tiny parameter arrays into two resident slabs (2 prologue
    # DMAs instead of 8).  Zero padding in the slabs is never read: the kernel
    # takes static sub-views of the exact layer shapes.
    nho = max(nh1, nh2, nh3)                        # max out-features (hidden)
    nhi = max(F, nh1, nh2)                          # max in-features  (hidden)
    w_slab = jnp.zeros((3, nho, nhi), jnp.float32)
    w_slab = w_slab.at[0, :nh1, :F].set(w1)
    w_slab = w_slab.at[1, :nh2, :nh1].set(w2)
    w_slab = w_slab.at[2, :nh3, :nh2].set(w3)

    misc = jnp.zeros((nho, 5), jnp.float32)
    misc = misc.at[:nh1, 0].set(params["b1"].astype(jnp.float32))
    misc = misc.at[:nh2, 1].set(params["b2"].astype(jnp.float32))
    misc = misc.at[:nh3, 2].set(params["b3"].astype(jnp.float32))
    misc = misc.at[:nh3, 3].set(wo.reshape(-1))
    misc = misc.at[0, 4].set(params["bo"].astype(jnp.float32).reshape(()))

    def kernel(x_ref, w_ref, m_ref, o_ref):
        # x tile in natural (tb, F) layout; feature-major activations after
        # the first matmul keep every layer -- and the (1, tb) output --
        # lane-dense.
        x_blk = x_ref[...]                          # (tb, F) f32
        w1_ = w_ref[0, :nh1, :F]
        w2_ = w_ref[1, :nh2, :nh1]
        w3_ = w_ref[2, :nh3, :nh2]
        b1_ = m_ref[:nh1, 0:1]
        b2_ = m_ref[:nh2, 1:2]
        b3_ = m_ref[:nh3, 2:3]
        wo_ = m_ref[:nh3, 3:4]
        bo_ = m_ref[0:1, 4:5]

        # fc1: contract over F on both operands (transpose folded into the
        # MXU contraction) -> (nh1, tb).  Dropout = identity (eval mode).
        h = lax.dot_general(w1_, x_blk, (((1,), (1,)), ((), ())),
                            preferred_element_type=jnp.float32)
        h = jnp.maximum(h + b1_, 0.0)
        # fc2 / fc3 -> ReLU
        h = jnp.maximum(
            jnp.dot(w2_, h, preferred_element_type=jnp.float32) + b2_, 0.0)
        h = jnp.maximum(
            jnp.dot(w3_, h, preferred_element_type=jnp.float32) + b3_, 0.0)
        # Output layer (nh3 -> 1): VPU multiply + cross-sublane reduce (MXU
        # would waste ~all lanes).  act_fn(F.relu(output(x))) == relu(...).
        out = jnp.sum(h * wo_, axis=0, keepdims=True) + bo_
        o_ref[...] = jnp.maximum(out, 0.0).astype(o_ref.dtype)

    flops = 2 * B * (F * nh1 + nh1 * nh2 + nh2 * nh3 + nh3)
    bytes_accessed = (int(x.size) * 4 + B * 4
                      + int(w_slab.size) * 4 + int(misc.size) * 4)

    out = pl.pallas_call(
        kernel,
        out_shape=jax.ShapeDtypeStruct((1, B), jnp.float32),
        grid=(n_tiles,),
        in_specs=[
            pl.BlockSpec((tb, F), lambda i: (i, 0)),           # streamed x
            pl.BlockSpec((3, nho, nhi), lambda i: (0, 0, 0)),  # resident W
            pl.BlockSpec((nho, 5), lambda i: (0, 0)),          # resident b/wo/bo
        ],
        out_specs=pl.BlockSpec((1, tb), lambda i: (0, i)),
        compiler_params=pltpu.CompilerParams(
            dimension_semantics=("parallel",),
            vmem_limit_bytes=32 * 1024 * 1024),
        cost_estimate=pl.CostEstimate(
            flops=flops, transcendentals=0, bytes_accessed=bytes_accessed),
    )(x.astype(jnp.float32), w_slab, misc)

    return out.reshape(B, 1)


def init_params(key, n_features=20, nh1=20, nh2=20, nh3=20):
    """PyTorch-default-style init, PyTorch-native layouts: W (out, in), b (out,)."""
    def linear(k, fan_in, fan_out):
        kw, kb = jax.random.split(k)
        bound = fan_in ** -0.5
        w = jax.random.uniform(kw, (fan_out, fan_in), jnp.float32, -bound, bound)
        b = jax.random.uniform(kb, (fan_out,), jnp.float32, -bound, bound)
        return w, b

    k1, k2, k3, k4 = jax.random.split(key, 4)
    w1, b1 = linear(k1, n_features, nh1)
    w2, b2 = linear(k2, nh1, nh2)
    w3, b3 = linear(k3, nh2, nh3)
    wo, bo = linear(k4, nh3, 1)
    return {"w1": w1, "b1": b1, "w2": w2, "b2": b2,
            "w3": w3, "b3": b3, "wo": wo, "bo": bo}


if __name__ == "__main__":
    key = jax.random.PRNGKey(0)
    kx, kp = jax.random.split(key)

    B, n_features = 300, 20          # B % 128 != 0 -> exercises ragged last block
    x = jax.random.normal(kx, (B, n_features), jnp.float32)
    params = init_params(kp, n_features=n_features)

    out = jax.block_until_ready(net3_forward(x, params))
    ref = _reference(x, params)

    assert out.shape == (B, 1), out.shape
    # MXU default precision for f32 dots differs slightly from the XLA ref.
    max_err = jnp.max(jnp.abs(out - ref))
    assert jnp.allclose(out, ref, atol=2e-2, rtol=2e-2), \
        f"max abs err = {max_err}"

    # Tiny-batch path dispatches to the fused XLA reference (launch-bound regime).
    out_small = jax.block_until_ready(net3_forward(x[:8], params))
    assert out_small.shape == (8, 1)
    assert jnp.allclose(out_small, ref[:8], atol=1e-5, rtol=1e-5)

    print("KERNEL_OK")
</pallas_src>

<mosaic_0001>
module attributes {stable_mosaic.version = 11 : i64} {
  func.func @kernel(%arg0: i32, %arg1: memref<128x20xf32, #tpu.memory_space<vmem>>, %arg2: memref<3x20x20xf32, #tpu.memory_space<vmem>>, %arg3: memref<20x5xf32, #tpu.memory_space<vmem>>, %arg4: memref<1x128xf32, #tpu.memory_space<vmem>>) attributes {dimension_semantics = [#tpu.dimension_semantics<parallel>], iteration_bounds = array<i64: 3>, scalar_prefetch = 0 : i64, scratch_operands = 0 : i64, tpu.core_type = #tpu.core_type<tc>, window_params = [{transform_indices = @transform_0, window_bounds = array<i64: 128, 20>}, {pipeline_mode = #tpu.pipeline_mode<synchronous>, transform_indices = @transform_1, window_bounds = array<i64: 3, 20, 20>}, {pipeline_mode = #tpu.pipeline_mode<synchronous>, transform_indices = @transform_2, window_bounds = array<i64: 20, 5>}, {transform_indices = @transform_3, window_bounds = array<i64: 1, 128>}]} {
    %c0 = arith.constant 0 : index
    %c0_0 = arith.constant 0 : index
    %0 = vector.load %arg1[%c0, %c0_0] : memref<128x20xf32, #tpu.memory_space<vmem>>, vector<128x20xf32>
    %c0_1 = arith.constant 0 : index
    %c0_2 = arith.constant 0 : index
    %c0_3 = arith.constant 0 : index
    %1 = vector.load %arg2[%c0_1, %c0_2, %c0_3] : memref<3x20x20xf32, #tpu.memory_space<vmem>>, vector<1x20x20xf32>
    %2 = vector.shape_cast %1 : vector<1x20x20xf32> to vector<20x20xf32>
    %c1 = arith.constant 1 : index
    %c0_4 = arith.constant 0 : index
    %c0_5 = arith.constant 0 : index
    %3 = vector.load %arg2[%c1, %c0_4, %c0_5] : memref<3x20x20xf32, #tpu.memory_space<vmem>>, vector<1x20x20xf32>
    %4 = vector.shape_cast %3 : vector<1x20x20xf32> to vector<20x20xf32>
    %c2 = arith.constant 2 : index
    %c0_6 = arith.constant 0 : index
    %c0_7 = arith.constant 0 : index
    %5 = vector.load %arg2[%c2, %c0_6, %c0_7] : memref<3x20x20xf32, #tpu.memory_space<vmem>>, vector<1x20x20xf32>
    %6 = vector.shape_cast %5 : vector<1x20x20xf32> to vector<20x20xf32>
    %c0_8 = arith.constant 0 : index
    %c0_9 = arith.constant 0 : index
    %7 = vector.load %arg3[%c0_8, %c0_9] : memref<20x5xf32, #tpu.memory_space<vmem>>, vector<20x1xf32>
    %c0_10 = arith.constant 0 : index
    %c1_11 = arith.constant 1 : index
    %8 = vector.load %arg3[%c0_10, %c1_11] : memref<20x5xf32, #tpu.memory_space<vmem>>, vector<20x1xf32>
    %c0_12 = arith.constant 0 : index
    %c2_13 = arith.constant 2 : index
    %9 = vector.load %arg3[%c0_12, %c2_13] : memref<20x5xf32, #tpu.memory_space<vmem>>, vector<20x1xf32>
    %c0_14 = arith.constant 0 : index
    %c3 = arith.constant 3 : index
    %10 = vector.load %arg3[%c0_14, %c3] : memref<20x5xf32, #tpu.memory_space<vmem>>, vector<20x1xf32>
    %c0_15 = arith.constant 0 : index
    %c4 = arith.constant 4 : index
    %11 = vector.load %arg3[%c0_15, %c4] : memref<20x5xf32, #tpu.memory_space<vmem>>, vector<1x1xf32>
    %cst = arith.constant dense<0.000000e+00> : vector<20x128xf32>
    %12 = tpu.matmul %2, %0, %cst {dimension_numbers = #tpu.dot_dimension_numbers<[1], [1], [0], [0], [0, 0, 1, 0], [], []>} : vector<20x20xf32>, vector<128x20xf32>, vector<20x128xf32> -> vector<20x128xf32>
    %13 = vector.broadcast %7 : vector<20x1xf32> to vector<20x128xf32>
    %14 = arith.addf %12, %13 : vector<20x128xf32>
    %cst_16 = arith.constant 0.000000e+00 : f32
    %15 = vector.broadcast %cst_16 : f32 to vector<20x128xf32>
    %16 = arith.maximumf %14, %15 : vector<20x128xf32>
    %cst_17 = arith.constant dense<0.000000e+00> : vector<20x128xf32>
    %17 = tpu.matmul %4, %16, %cst_17 {dimension_numbers = #tpu.dot_dimension_numbers<[1], [0], [0], [1], [0, 0, 1, 1], [], []>} : vector<20x20xf32>, vector<20x128xf32>, vector<20x128xf32> -> vector<20x128xf32>
    %18 = vector.broadcast %8 : vector<20x1xf32> to vector<20x128xf32>
    %19 = arith.addf %17, %18 : vector<20x128xf32>
    %cst_18 = arith.constant 0.000000e+00 : f32
    %20 = vector.broadcast %cst_18 : f32 to vector<20x128xf32>
    %21 = arith.maximumf %19, %20 : vector<20x128xf32>
    %cst_19 = arith.constant dense<0.000000e+00> : vector<20x128xf32>
    %22 = tpu.matmul %6, %21, %cst_19 {dimension_numbers = #tpu.dot_dimension_numbers<[1], [0], [0], [1], [0, 0, 1, 1], [], []>} : vector<20x20xf32>, vector<20x128xf32>, vector<20x128xf32> -> vector<20x128xf32>
    %23 = vector.broadcast %9 : vector<20x1xf32> to vector<20x128xf32>
    %24 = arith.addf %22, %23 : vector<20x128xf32>
    %cst_20 = arith.constant 0.000000e+00 : f32
    %25 = vector.broadcast %cst_20 : f32 to vector<20x128xf32>
    %26 = arith.maximumf %24, %25 : vector<20x128xf32>
    %27 = vector.broadcast %10 : vector<20x1xf32> to vector<20x128xf32>
    %28 = arith.mulf %26, %27 : vector<20x128xf32>
    %cst_21 = arith.constant dense<0.000000e+00> : vector<128xf32>
    %29 = vector.multi_reduction <add>, %28, %cst_21 [0] : vector<20x128xf32> to vector<128xf32>
    %30 = vector.shape_cast %29 : vector<128xf32> to vector<1x128xf32>
    %31 = vector.broadcast %11 : vector<1x1xf32> to vector<1x128xf32>
    %32 = arith.addf %30, %31 : vector<1x128xf32>
    %cst_22 = arith.constant 0.000000e+00 : f32
    %33 = vector.broadcast %cst_22 : f32 to vector<1x128xf32>
    %34 = arith.maximumf %32, %33 : vector<1x128xf32>
    %c0_23 = arith.constant 0 : index
    %c0_24 = arith.constant 0 : index
    %35 = vector.load %arg4[%c0_23, %c0_24] : memref<1x128xf32, #tpu.memory_space<vmem>>, vector<1x128xf32>
    tpu.vector_store %arg4[%c0_23, %c0_24], %34 {strides = array<i32>} : memref<1x128xf32, #tpu.memory_space<vmem>>, vector<1x128xf32>,
    return
  }
  func.func @transform_0(%arg0: i32) -> (i32, i32) {
    %c0_i32 = arith.constant 0 : i32
    %c0_i32_0 = arith.constant 0 : i32
    return %arg0, %c0_i32 : i32, i32
  }
  func.func @transform_1(%arg0: i32) -> (i32, i32, i32) {
    %c0_i32 = arith.constant 0 : i32
    %c0_i32_0 = arith.constant 0 : i32
    %c0_i32_1 = arith.constant 0 : i32
    %c0_i32_2 = arith.constant 0 : i32
    return %c0_i32, %c0_i32_0, %c0_i32_1 : i32, i32, i32
  }
  func.func @transform_2(%arg0: i32) -> (i32, i32) {
    %c0_i32 = arith.constant 0 : i32
    %c0_i32_0 = arith.constant 0 : i32
    %c0_i32_1 = arith.constant 0 : i32
    return %c0_i32, %c0_i32_0 : i32, i32
  }
  func.func @transform_3(%arg0: i32) -> (i32, i32) {
    %c0_i32 = arith.constant 0 : i32
    %c0_i32_0 = arith.constant 0 : i32
    return %c0_i32, %arg0 : i32, i32
  }
}

</mosaic_0001>

<llo_original>
// kernel: tpu_custom_call.1
$region0: #{tpu_custom_call.1}
  #allocation0 [shape = 'u32[]', space=smem, size = 0x4, offset = 0x4, fixed_abs, tag = 'smem constant byte address 0x4 - core index']
  #allocation1 [shape = 'u32[144,128]{1,0:T(1,128)}', space=vmem, size = 0x12000, scoped, tag = 'internal scratch']
  %s0 = inlined_call_operand.vmem [shape: f32[300,20], index: 0, kind: input, shape index: {}]
  %s1 = inlined_call_operand.vmem [shape: f32[3,20,20], index: 1, kind: input, shape index: {}]
  %s2 = inlined_call_operand.vmem [shape: f32[20,5], index: 2, kind: input, shape index: {}]
  %s3 = inlined_call_operand.hbm [shape: f32[1,300], index: 3, kind: output, shape index: {}]
  %s4 = sld [smem:[#allocation0]]
  $region45: #{tpu_custom_call.1} parent=0
    _
  %s6 = ssub.s32 1, %s4
  %s7 = scalar_select 0, %s6, %s4
  $region1: #{tpu_custom_call.1} parent=0
    #allocation2 [shape = 'u8[1024]{0}', space=vmem, size = 0x400, scoped, tag = 'output window, operand 0']
    #allocation3 [shape = 's32[2]{0}', space=sflag, size = 0x8, scoped, tag = 'scoped memory for tpu_custom_call.1']
    %8 = vsyncpa [#allocation3], 0
    %s9 = scalar_lea.sflag [#allocation3], 1
    %10 = vsyncpa %s9, 0
    loop: start=0, step=1, limit=5
    $region2: #{tpu_custom_call.1} parent=1 // loop_pre_header
      _
    $region3: #{tpu_custom_call.1} parent=1 // loop_header
      %s12 = sphi 0, %s16
      %p13 = scmp.ge.s32.totalorder %s12, 5
      %s22 = sphi 0, %s24
      %s25 = sphi 0, %s22
      %s26 = sphi 0, %s25
      %s42 = sphi 0, %s26
      %s46 = sphi 0, %s46
      %s48 = sphi 0, %s46
      %s49 = sphi 0, %s48
      %s63 = sphi 0, %s49
      %s67 = sphi 0, %s67
      %s69 = sphi 0, %s67
      %s70 = sphi 0, %s69
      %s84 = sphi 0, %s70
      %s90 = sphi 0, %s92
      %s93 = sphi 0, %s90
      %s94 = sphi 0, %s93
      %s110 = sphi 0, %s94
    $region4: #{tpu_custom_call.1} parent=1 // loop_header_branch
      %15 = sbr.rel (%p13) target = $region8
    $region5: #{tpu_custom_call.1} parent=1 // loop_body
      %s17 = ssub.s32 %s12, 1
      %s18 = ssub.s32 %s12, 2
      %s19 = sadd.s32 %s12, 1
      %s20 = ssub.s32 %s12, %s19
      %p21 = scmp.eq.s32.totalorder %s20, 0
      %s23 = sadd.s32 %s22, 1
      %s24 = scalar_select %p21, %s22, %s23
      %p27 = pneg %p21
      %p28 = scmp.eq.s32.totalorder %s12, 2
      %p29 = por %p27, %p28
      %p30 = scmp.ne.s32.totalorder %s22, %s25
      %p31 = scmp.eq.s32.totalorder %s12, 0
      %p32 = por %p30, %p31
      %p33 = scmp.ne.s32.totalorder %s22, %s25
      %p34 = scmp.eq.s32.totalorder %s17, 2
      %p35 = por %p33, %p34
      %p36 = scmp.ne.s32.totalorder %s25, %s26
      %p37 = scmp.eq.s32.totalorder %s17, 0
      %p38 = por %p36, %p37
      %p39 = scmp.ne.s32.totalorder %s25, %s26
      %p40 = scmp.eq.s32.totalorder %s18, 2
      %p41 = por %p39, %p40
      %p43 = scmp.ne.s32.totalorder %s26, %s42
      %p44 = scmp.eq.s32.totalorder %s18, 0
      %p45 = por %p43, %p44
      %s47 = sadd.s32 %s46, 1
      %p50 = scmp.eq.s32.totalorder %s12, 2
      %p51 = scmp.ne.s32.totalorder %s46, %s48
      %p52 = scmp.eq.s32.totalorder %s12, 0
      %p53 = por %p51, %p52
      %p54 = scmp.ne.s32.totalorder %s46, %s48
      %p55 = scmp.eq.s32.totalorder %s17, 2
      %p56 = por %p54, %p55
      %p57 = scmp.ne.s32.totalorder %s48, %s49
      %p58 = scmp.eq.s32.totalorder %s17, 0
      %p59 = por %p57, %p58
      %p60 = scmp.ne.s32.totalorder %s48, %s49
      %p61 = scmp.eq.s32.totalorder %s18, 2
      %p62 = por %p60, %p61
      %p64 = scmp.ne.s32.totalorder %s49, %s63
      %p65 = scmp.eq.s32.totalorder %s18, 0
      %p66 = por %p64, %p65
      %s68 = sadd.s32 %s67, 1
      %p71 = scmp.eq.s32.totalorder %s12, 2
      %p72 = scmp.ne.s32.totalorder %s67, %s69
      %p73 = scmp.eq.s32.totalorder %s12, 0
      %p74 = por %p72, %p73
      %p75 = scmp.ne.s32.totalorder %s67, %s69
      %p76 = scmp.eq.s32.totalorder %s17, 2
      %p77 = por %p75, %p76
      %p78 = scmp.ne.s32.totalorder %s69, %s70
      %p79 = scmp.eq.s32.totalorder %s17, 0
      %p80 = por %p78, %p79
      %p81 = scmp.ne.s32.totalorder %s69, %s70
      %p82 = scmp.eq.s32.totalorder %s18, 2
      %p83 = por %p81, %p82
      %p85 = scmp.ne.s32.totalorder %s70, %s84
      %p86 = scmp.eq.s32.totalorder %s18, 0
      %p87 = por %p85, %p86
      %s88 = ssub.s32 %s12, %s19
      %p89 = scmp.eq.s32.totalorder %s88, 0
      %s91 = sadd.s32 %s90, 1
      %s92 = scalar_select %p89, %s90, %s91
      %p95 = pneg %p89
      %p96 = scmp.eq.s32.totalorder %s12, 2
      %p97 = por %p95, %p96
      %p98 = scmp.ne.s32.totalorder %s90, %s93
      %p99 = scmp.eq.s32.totalorder %s12, 0
      %p100 = por %p98, %p99
      %p101 = scmp.ne.s32.totalorder %s90, %s93
      %p102 = scmp.eq.s32.totalorder %s17, 2
      %p103 = por %p101, %p102
      %p104 = scmp.ne.s32.totalorder %s93, %s94
      %p105 = scmp.eq.s32.totalorder %s17, 0
      %p106 = por %p104, %p105
      %p107 = scmp.ne.s32.totalorder %s93, %s94
      %p108 = scmp.eq.s32.totalorder %s18, 2
      %p109 = por %p107, %p108
      %p111 = scmp.ne.s32.totalorder %s94, %s110
      %p112 = scmp.eq.s32.totalorder %s18, 0
      %p113 = por %p111, %p112
      %p114 = scmp.le.s32.totalorder 1, %s12
      %p115 = scmp.lt.s32.totalorder %s12, 4
      %p116 = pnand %p114, %p115
      %p117 = pneg %p116
      // Predicated region
      $region9: #{tpu_custom_call.1} parent=5 // pred_check
        _
      $region10: #{tpu_custom_call.1} parent=5 // pred_check_branch
        %119 = sbr.rel (%p116) target = $region12
      $region11: #{tpu_custom_call.1} parent=5 // pred_region
        %s120 = ssub.s32 %s12, 1
        // Predicated region
        $region13: #{tpu_custom_call.1} parent=11 // pred_check
          %p121 = pneg %p59
        $region14: #{tpu_custom_call.1} parent=11 // pred_check_branch
          %123 = sbr.rel (%p121) target = $region16
        $region15: #{tpu_custom_call.1} parent=11 // pred_region
          _
        $region16: #{tpu_custom_call.1} parent=11 // pred_fallthru
          _
        // Predicated region
        $region17: #{tpu_custom_call.1} parent=11 // pred_check
          %p124 = pneg %p80
        $region18: #{tpu_custom_call.1} parent=11 // pred_check_branch
          %126 = sbr.rel (%p124) target = $region20
        $region19: #{tpu_custom_call.1} parent=11 // pred_region
          _
        $region20: #{tpu_custom_call.1} parent=11 // pred_fallthru
          _
      $region12: #{tpu_custom_call.1} parent=5 // pred_fallthru
        _
      %p127 = scmp.lt.s32.totalorder %s12, 3
      // Predicated region
      $region21: #{tpu_custom_call.1} parent=5 // pred_check
        %p128 = pneg %p127
      $region22: #{tpu_custom_call.1} parent=5 // pred_check_branch
        %130 = sbr.rel (%p128) target = $region24
      $region23: #{tpu_custom_call.1} parent=5 // pred_region
        // Predicated region
        $region25: #{tpu_custom_call.1} parent=23 // pred_check
          %p131 = pneg %p32
        $region26: #{tpu_custom_call.1} parent=23 // pred_check_branch
          %133 = sbr.rel (%p131) target = $region28
        $region27: #{tpu_custom_call.1} parent=23 // pred_region
          %s134 = smul.u32 16, %s12
          %s135 = ssub.s32 38, %s134
          %p136 = scmp.lt.s32.totalorder %s135, 16
          %s137 = scalar_select %p136, %s135, 16
          %s138 = smul.u32 128, %s137
          %p139 = scmp.lt.s32.totalorder %s134, 37
          %s140 = scalar_select %p139, %s134, 37
          %s141 = smul.addr %s140, 8
          %s142 = scalar_lea.vmem %s0, %s141
          %s143 = smul.u32 16, %s12
          %s144 = ssub.s32 38, %s143
          %p145 = scmp.lt.s32.totalorder %s144, 16
          %s146 = scalar_select %p145, %s144, 16
          %s147 = smul.u32 128, %s146
        $region28: #{tpu_custom_call.1} parent=23 // pred_fallthru
          _
      $region24: #{tpu_custom_call.1} parent=5 // pred_fallthru
        _
      %p148 = scmp.le.s32.totalorder 1, %s12
      %p149 = scmp.lt.s32.totalorder %s12, 4
      %p150 = pnand %p148, %p149
      %p151 = pneg %p150
      // Predicated region
      $region29: #{tpu_custom_call.1} parent=5 // pred_check
        _
      $region30: #{tpu_custom_call.1} parent=5 // pred_check_branch
        %153 = sbr.rel (%p150) target = $region32
      $region31: #{tpu_custom_call.1} parent=5 // pred_region
        %s154 = ssub.s32 %s12, 1
        %s155 = smul.u32 16, %s17
        %s156 = ssub.s32 38, %s155
        %p157 = scmp.lt.s32.totalorder %s156, 16
        %s158 = scalar_select %p157, %s156, 16
        %s159 = smul.u32 128, %s158
        %p160 = scmp.lt.s32.totalorder %s155, 37
        %s161 = scalar_select %p160, %s155, 37
        %s162 = smul.addr %s161, 8
        %s163 = scalar_lea.vmem %s0, %s162
        %p164 = pneg %p38
        %p165 = pneg %p35
        %p166 = pneg %p59
        %p167 = pneg %p56
        %p168 = pneg %p80
        %p169 = pneg %p77
        %p170 = pneg %p106
        %p171 = pneg %p103
        %s172 = sand.u32 %s93, 1
        %s173 = scalar_lea.sflag [#allocation3], %s172
        %s174 = sand.u32 %s93, 1
        %s175 = scalar_lea.vmem [#allocation2], %s174
        %s176 = smul.u32 16, %s17
        %s177 = ssub.s32 38, %s176
        %p178 = scmp.lt.s32.totalorder %s177, 16
        %s179 = scalar_select %p178, %s177, 16
        %s180 = smul.u32 128, %s179
        %p181 = scmp.lt.s32.totalorder %s176, 37
        %s182 = scalar_select %p181, %s176, 37
        %s183 = smul.addr %s182, 8
        %s184 = scalar_lea.vmem %s0, %s183
        %s185 = smul.u32 16, %s17
        %s186 = ssub.s32 38, %s185
        %p187 = scmp.lt.s32.totalorder %s186, 16
        %s188 = scalar_select %p187, %s186, 16
        %s189 = smul.u32 128, %s188
        %v190 = vld [vmem:[%s184] sm:$0xff]
        %v191 = vld [vmem:[%s184 + $0x8] sm:$0xff]
        %v192 = vld [vmem:[%s184 + $0x10] sm:$0xff]
        %v193 = vld [vmem:[%s184 + $0x18] sm:$0xff]
        %v194 = vld [vmem:[%s184 + $0x20] sm:$0xff]
        %v195 = vld [vmem:[%s184 + $0x28] sm:$0xff]
        %v196 = vld [vmem:[%s184 + $0x30] sm:$0xff]
        %v197 = vld [vmem:[%s184 + $0x38] sm:$0xff]
        %v198 = vld [vmem:[%s184 + $0x40] sm:$0xff]
        %v199 = vld [vmem:[%s184 + $0x48] sm:$0xff]
        %v200 = vld [vmem:[%s184 + $0x50] sm:$0xff]
        %v201 = vld [vmem:[%s184 + $0x58] sm:$0xff]
        %v202 = vld [vmem:[%s184 + $0x60] sm:$0xff]
        %v203 = vld [vmem:[%s184 + $0x68] sm:$0xff]
        %v204 = vld [vmem:[%s184 + $0x70] sm:$0xff]
        %v205 = vld [vmem:[%s184 + $0x78] sm:$0xff]
        %v206 = vld [vmem:[%s1] sm:$0xff]
        %v207 = vld [vmem:[%s1 + $0x8] sm:$0xff]
        %v208 = vld [vmem:[%s1 + $0x10] sm:$0xf]
        %s209 = scalar_lea.vmem %s1, 24
        %v210 = vld [vmem:[%s209] sm:$0xff]
        %v211 = vld [vmem:[%s209 + $0x8] sm:$0xff]
        %v212 = vld [vmem:[%s209 + $0x10] sm:$0xf]
        %s213 = scalar_lea.vmem %s1, 48
        %v214 = vld [vmem:[%s213] sm:$0xff]
        %v215 = vld [vmem:[%s213 + $0x8] sm:$0xff]
        %v216 = vld [vmem:[%s213 + $0x10] sm:$0xf]
        %v217 = vld [vmem:[%s2] sm:$0xff]
        %v218 = vld [vmem:[%s2 + $0x8] sm:$0xff]
        %v219 = vld [vmem:[%s2 + $0x10] sm:$0xf]
        %v220 = vld [vmem:[%s2] sm:$0x1]
        %222 = vset.pattern.permute.xlu0 0
        %223 = vperm.xlu0 %222, %v217
        %v224 = vpop.permute.xlu0 %223
        %227 = vset.pattern.permute.xlu0 0
        %228 = vperm.xlu0 %227, %v218
        %v229 = vpop.permute.xlu0 %228
        %232 = vset.pattern.permute.xlu0 0
        %233 = vperm.xlu0 %232, %v219
        %v234 = vpop.permute.xlu0 %233
        %vm236 = vcmask 162816
        %v238 = vsel %vm236, %v206, 0
        %v241 = vsel %vm236, %v207, 0
        %v244 = vsel %vm236, %v208, 0
        %v247 = vsel %vm236, %v190, 0
        %v250 = vsel %vm236, %v191, 0
        %v253 = vsel %vm236, %v192, 0
        %v256 = vsel %vm236, %v193, 0
        %v259 = vsel %vm236, %v194, 0
        %v262 = vsel %vm236, %v195, 0
        %v265 = vsel %vm236, %v196, 0
        %v268 = vsel %vm236, %v197, 0
        %v271 = vsel %vm236, %v198, 0
        %v274 = vsel %vm236, %v199, 0
        %v277 = vsel %vm236, %v200, 0
        %v280 = vsel %vm236, %v201, 0
        %v283 = vsel %vm236, %v202, 0
        %v286 = vsel %vm236, %v203, 0
        %v289 = vsel %vm236, %v204, 0
        %v292 = vsel %vm236, %v205, 0
        %294 = vmatprep.subr.mxu0 0.0
        %295 = vmatpush1.xpose.msra.mxu0 %v247
        %296 = vmatprep.subr.mxu0 0.0
        %297 = vmatpush1.xpose.msra.mxu0 %v250
        %298 = vmatprep.subr.mxu0 0.0
        %299 = vmatpush1.xpose.msra.mxu0 %v253
        %300 = vmatprep.subr.mxu0 0.0
        %301 = vmatpush1.xpose.msra.mxu0 %v256
        %302 = vmatprep.subr.mxu0 0.0
        %303 = vmatpush1.xpose.msra.mxu0 %v259
        %304 = vmatprep.subr.mxu0 0.0
        %305 = vmatpush1.xpose.msra.mxu0 %v262
        %306 = vmatprep.subr.mxu0 0.0
        %307 = vmatpush1.xpose.msra.mxu0 %v265
        %308 = vmatprep.subr.mxu0 0.0
        %309 = vmatpush1.xpose.msra.mxu0 %v268
        %310 = vmatprep.subr.mxu0 0.0
        %311 = vmatpush1.xpose.msra.mxu0 %v271
        %312 = vmatprep.subr.mxu0 0.0
        %313 = vmatpush1.xpose.msra.mxu0 %v274
        %314 = vmatprep.subr.mxu0 0.0
        %315 = vmatpush1.xpose.msra.mxu0 %v277
        %316 = vmatprep.subr.mxu0 0.0
        %317 = vmatpush1.xpose.msra.mxu0 %v280
        %318 = vmatprep.subr.mxu0 0.0
        %319 = vmatpush1.xpose.msra.mxu0 %v283
        %320 = vmatprep.subr.mxu0 0.0
        %321 = vmatpush1.xpose.msra.mxu0 %v286
        %322 = vmatprep.subr.mxu0 0.0
        %323 = vmatpush1.xpose.msra.mxu0 %v289
        %324 = vmatprep.subr.mxu0 0.0
        %325 = vmatpush1.xpose.msra.mxu0 %v292
        %326 = vmatprep.subr.mxu0 0.0
        %327 = vmatpush1.xpose.msra.mxu0 0.0
        %328 = vmatprep.subr.mxu0 0.0
        %329 = vmatpush1.xpose.msra.mxu0 0.0
        %330 = vmatprep.subr.mxu0 0.0
        %331 = vmatpush1.xpose.msra.mxu0 0.0
        %332 = vmatprep.subr.mxu0 0.0
        %333 = vmatpush1.xpose.msra.mxu0 0.0
        %334 = vmatprep.subr.mxu0 0.0
        %335 = vmatpush1.xpose.msra.mxu0 0.0
        %336 = vmatprep.subr.mxu0 0.0
        %337 = vmatpush1.xpose.msra.mxu0 0.0
        %338 = vmatprep.subr.mxu0 0.0
        %339 = vmatpush1.xpose.msra.mxu0 0.0
        %340 = vmatprep.subr.mxu0 0.0
        %341 = vmatpush1.xpose.msra.mxu0 0.0
        %342 = vmatprep.subr.mxu0 0.0
        %343 = vmatpush1.xpose.msra.mxu0 0.0
        %344 = vmatprep.subr.mxu0 0.0
        %345 = vmatpush1.xpose.msra.mxu0 0.0
        %346 = vmatprep.subr.mxu0 0.0
        %347 = vmatpush1.xpose.msra.mxu0 0.0
        %348 = vmatprep.subr.mxu0 0.0
        %349 = vmatpush1.xpose.msra.mxu0 0.0
        %350 = vmatprep.subr.mxu0 0.0
        %351 = vmatpush1.xpose.msra.mxu0 0.0
        %352 = vmatprep.subr.mxu0 0.0
        %353 = vmatpush1.xpose.msra.mxu0 0.0
        %354 = vmatprep.subr.mxu0 0.0
        %355 = vmatpush1.xpose.msra.mxu0 0.0
        %356 = vmatprep.subr.mxu0 0.0
        %357 = vmatpush1.xpose.msra.mxu0 0.0
        %358 = vmatprep.mubr.f32.mxu0 0.0
        %359 = vmatmul.mubr.f32.gmra.mrb[0].mxu0 %v238
        %v360 = vpop.f32.mrb[0].mxu0
        %v361 = vadd.f32 %v224, %v360
        %v362 = vpop.f32.mrb[0].mxu0
        %363 = vmatprep.mubr.f32.mxu0 0.0
        %364 = vmatmul.mubr.f32.gmra.mrb[0].mxu0 %v241
        %v365 = vpop.f32.mrb[0].mxu0
        %v366 = vadd.f32 %v229, %v365
        %v367 = vpop.f32.mrb[0].mxu0
        %368 = vmatprep.mubr.f32.mxu0 0.0
        %369 = vmatmul.mubr.f32.gmra.mrb[0].mxu0 %v244
        %v370 = vpop.f32.mrb[0].mxu0
        %v371 = vadd.f32 %v234, %v370
        %v372 = vpop.f32.mrb[0].mxu0
        %373 = vdwg.mxu0
        %v374 = vmax.f32 %v361, 0.0
        %v375 = vmax.f32 %v366, 0.0
        %v376 = vmax.f32 %v371, 0.0
        %377 = vset.pattern.permute.xlu0 1
        %378 = vperm.xlu0 %377, %v217
        %v379 = vpop.permute.xlu0 %378
        %381 = vset.pattern.permute.xlu0 1
        %382 = vperm.xlu0 %381, %v218
        %v383 = vpop.permute.xlu0 %382
        %385 = vset.pattern.permute.xlu0 1
        %386 = vperm.xlu0 %385, %v219
        %v387 = vpop.permute.xlu0 %386
        %v390 = vsel %vm236, %v210, 0
        %v393 = vsel %vm236, %v211, 0
        %v396 = vsel %vm236, %v212, 0
        %vm398 = vcmask 1043456
        %v400 = vsel %vm398, %v376, 0
        %402 = vmatprep.subr.mxu0 0.0
        %403 = vmatpush1.msra.mxu0 %v374
        %404 = vmatprep.subr.mxu0 0.0
        %405 = vmatpush1.msra.mxu0 %v375
        %406 = vmatprep.subr.mxu0 0.0
        %407 = vmatpush1.msra.mxu0 %v400
        %408 = vmatprep.subr.mxu0 0.0
        %409 = vmatpush1.msra.mxu0 0.0
        %410 = vmatprep.subr.mxu0 0.0
        %411 = vmatpush1.msra.mxu0 0.0
        %412 = vmatprep.subr.mxu0 0.0
        %413 = vmatpush1.msra.mxu0 0.0
        %414 = vmatprep.subr.mxu0 0.0
        %415 = vmatpush1.msra.mxu0 0.0
        %416 = vmatprep.subr.mxu0 0.0
        %417 = vmatpush1.msra.mxu0 0.0
        %418 = vmatprep.subr.mxu0 0.0
        %419 = vmatpush1.msra.mxu0 0.0
        %420 = vmatprep.subr.mxu0 0.0
        %421 = vmatpush1.msra.mxu0 0.0
        %422 = vmatprep.subr.mxu0 0.0
        %423 = vmatpush1.msra.mxu0 0.0
        %424 = vmatprep.subr.mxu0 0.0
        %425 = vmatpush1.msra.mxu0 0.0
        %426 = vmatprep.subr.mxu0 0.0
        %427 = vmatpush1.msra.mxu0 0.0
        %428 = vmatprep.subr.mxu0 0.0
        %429 = vmatpush1.msra.mxu0 0.0
        %430 = vmatprep.subr.mxu0 0.0
        %431 = vmatpush1.msra.mxu0 0.0
        %432 = vmatprep.subr.mxu0 0.0
        %433 = vmatpush1.msra.mxu0 0.0
        %434 = vmatprep.subr.mxu0 0.0
        %435 = vmatpush1.msra.mxu0 0.0
        %436 = vmatprep.subr.mxu0 0.0
        %437 = vmatpush1.msra.mxu0 0.0
        %438 = vmatprep.subr.mxu0 0.0
        %439 = vmatpush1.msra.mxu0 0.0
        %440 = vmatprep.subr.mxu0 0.0
        %441 = vmatpush1.msra.mxu0 0.0
        %442 = vmatprep.subr.mxu0 0.0
        %443 = vmatpush1.msra.mxu0 0.0
        %444 = vmatprep.subr.mxu0 0.0
        %445 = vmatpush1.msra.mxu0 0.0
        %446 = vmatprep.subr.mxu0 0.0
        %447 = vmatpush1.msra.mxu0 0.0
        %448 = vmatprep.subr.mxu0 0.0
        %449 = vmatpush1.msra.mxu0 0.0
        %450 = vmatprep.subr.mxu0 0.0
        %451 = vmatpush1.msra.mxu0 0.0
        %452 = vmatprep.subr.mxu0 0.0
        %453 = vmatpush1.msra.mxu0 0.0
        %454 = vmatprep.subr.mxu0 0.0
        %455 = vmatpush1.msra.mxu0 0.0
        %456 = vmatprep.subr.mxu0 0.0
        %457 = vmatpush1.msra.mxu0 0.0
        %458 = vmatprep.subr.mxu0 0.0
        %459 = vmatpush1.msra.mxu0 0.0
        %460 = vmatprep.subr.mxu0 0.0
        %461 = vmatpush1.msra.mxu0 0.0
        %462 = vmatprep.subr.mxu0 0.0
        %463 = vmatpush1.msra.mxu0 0.0
        %464 = vmatprep.subr.mxu0 0.0
        %465 = vmatpush1.msra.mxu0 0.0
        %466 = vmatprep.mubr.f32.mxu0 0.0
        %467 = vmatmul.mubr.f32.gmra.mrb[0].mxu0 %v390
        %v468 = vpop.f32.mrb[0].mxu0
        %v469 = vadd.f32 %v379, %v468
        %v470 = vpop.f32.mrb[0].mxu0
        %471 = vmatprep.mubr.f32.mxu0 0.0
        %472 = vmatmul.mubr.f32.gmra.mrb[0].mxu0 %v393
        %v473 = vpop.f32.mrb[0].mxu0
        %v474 = vadd.f32 %v383, %v473
        %v475 = vpop.f32.mrb[0].mxu0
        %476 = vmatprep.mubr.f32.mxu0 0.0
        %477 = vmatmul.mubr.f32.gmra.mrb[0].mxu0 %v396
        %v478 = vpop.f32.mrb[0].mxu0
        %v479 = vadd.f32 %v387, %v478
        %v480 = vpop.f32.mrb[0].mxu0
        %481 = vdwg.mxu0
        %v482 = vmax.f32 %v469, 0.0
        %v483 = vmax.f32 %v474, 0.0
        %v484 = vmax.f32 %v479, 0.0
        %485 = vset.pattern.permute.xlu0 2
        %486 = vperm.xlu0 %485, %v217
        %v487 = vpop.permute.xlu0 %486
        %489 = vset.pattern.permute.xlu0 2
        %490 = vperm.xlu0 %489, %v218
        %v491 = vpop.permute.xlu0 %490
        %493 = vset.pattern.permute.xlu0 2
        %494 = vperm.xlu0 %493, %v219
        %v495 = vpop.permute.xlu0 %494
        %v498 = vsel %vm236, %v214, 0
        %v501 = vsel %vm236, %v215, 0
        %v504 = vsel %vm236, %v216, 0
        %v507 = vsel %vm398, %v484, 0
        %509 = vmatprep.subr.mxu0 0.0
        %510 = vmatpush1.msra.mxu0 %v482
        %511 = vmatprep.subr.mxu0 0.0
        %512 = vmatpush1.msra.mxu0 %v483
        %513 = vmatprep.subr.mxu0 0.0
        %514 = vmatpush1.msra.mxu0 %v507
        %515 = vmatprep.subr.mxu0 0.0
        %516 = vmatpush1.msra.mxu0 0.0
        %517 = vmatprep.subr.mxu0 0.0
        %518 = vmatpush1.msra.mxu0 0.0
        %519 = vmatprep.subr.mxu0 0.0
        %520 = vmatpush1.msra.mxu0 0.0
        %521 = vmatprep.subr.mxu0 0.0
        %522 = vmatpush1.msra.mxu0 0.0
        %523 = vmatprep.subr.mxu0 0.0
        %524 = vmatpush1.msra.mxu0 0.0
        %525 = vmatprep.subr.mxu0 0.0
        %526 = vmatpush1.msra.mxu0 0.0
        %527 = vmatprep.subr.mxu0 0.0
        %528 = vmatpush1.msra.mxu0 0.0
        %529 = vmatprep.subr.mxu0 0.0
        %530 = vmatpush1.msra.mxu0 0.0
        %531 = vmatprep.subr.mxu0 0.0
        %532 = vmatpush1.msra.mxu0 0.0
        %533 = vmatprep.subr.mxu0 0.0
        %534 = vmatpush1.msra.mxu0 0.0
        %535 = vmatprep.subr.mxu0 0.0
        %536 = vmatpush1.msra.mxu0 0.0
        %537 = vmatprep.subr.mxu0 0.0
        %538 = vmatpush1.msra.mxu0 0.0
        %539 = vmatprep.subr.mxu0 0.0
        %540 = vmatpush1.msra.mxu0 0.0
        %541 = vmatprep.subr.mxu0 0.0
        %542 = vmatpush1.msra.mxu0 0.0
        %543 = vmatprep.subr.mxu0 0.0
        %544 = vmatpush1.msra.mxu0 0.0
        %545 = vmatprep.subr.mxu0 0.0
        %546 = vmatpush1.msra.mxu0 0.0
        %547 = vmatprep.subr.mxu0 0.0
        %548 = vmatpush1.msra.mxu0 0.0
        %549 = vmatprep.subr.mxu0 0.0
        %550 = vmatpush1.msra.mxu0 0.0
        %551 = vmatprep.subr.mxu0 0.0
        %552 = vmatpush1.msra.mxu0 0.0
        %553 = vmatprep.subr.mxu0 0.0
        %554 = vmatpush1.msra.mxu0 0.0
        %555 = vmatprep.subr.mxu0 0.0
        %556 = vmatpush1.msra.mxu0 0.0
        %557 = vmatprep.subr.mxu0 0.0
        %558 = vmatpush1.msra.mxu0 0.0
        %559 = vmatprep.subr.mxu0 0.0
        %560 = vmatpush1.msra.mxu0 0.0
        %561 = vmatprep.subr.mxu0 0.0
        %562 = vmatpush1.msra.mxu0 0.0
        %563 = vmatprep.subr.mxu0 0.0
        %564 = vmatpush1.msra.mxu0 0.0
        %565 = vmatprep.subr.mxu0 0.0
        %566 = vmatpush1.msra.mxu0 0.0
        %567 = vmatprep.subr.mxu0 0.0
        %568 = vmatpush1.msra.mxu0 0.0
        %569 = vmatprep.subr.mxu0 0.0
        %570 = vmatpush1.msra.mxu0 0.0
        %571 = vmatprep.subr.mxu0 0.0
        %572 = vmatpush1.msra.mxu0 0.0
        %573 = vmatprep.mubr.f32.mxu0 0.0
        %574 = vmatmul.mubr.f32.gmra.mrb[0].mxu0 %v498
        %v575 = vpop.f32.mrb[0].mxu0
        %v576 = vadd.f32 %v487, %v575
        %v577 = vpop.f32.mrb[0].mxu0
        %578 = vmatprep.mubr.f32.mxu0 0.0
        %579 = vmatmul.mubr.f32.gmra.mrb[0].mxu0 %v501
        %v580 = vpop.f32.mrb[0].mxu0
        %v581 = vadd.f32 %v491, %v580
        %v582 = vpop.f32.mrb[0].mxu0
        %583 = vmatprep.mubr.f32.mxu0 0.0
        %584 = vmatmul.mubr.f32.gmra.mrb[0].mxu0 %v504
        %v585 = vpop.f32.mrb[0].mxu0
        %v586 = vadd.f32 %v495, %v585
        %v587 = vpop.f32.mrb[0].mxu0
        %588 = vdwg.mxu0
        %v589 = vmax.f32 %v576, 0.0
        %v590 = vmax.f32 %v581, 0.0
        %v591 = vmax.f32 %v586, 0.0
        %592 = vset.pattern.permute.xlu0 3
        %593 = vperm.xlu0 %592, %v217
        %v594 = vpop.permute.xlu0 %593
        %596 = vset.pattern.permute.xlu0 3
        %597 = vperm.xlu0 %596, %v218
        %v598 = vpop.permute.xlu0 %597
        %600 = vset.pattern.permute.xlu0 3
        %601 = vperm.xlu0 %600, %v219
        %v602 = vpop.permute.xlu0 %601
        %v604 = vmul.f32 %v589, %v594
        %v605 = vmul.f32 %v590, %v598
        %v606 = vmul.f32 %v591, %v602
        %v607 = vadd.f32 %v604, %v605
        %v608 = vsel %vm398, %v606, 0.0
        %v609 = vadd.f32 %v607, %v608
        %v610 = vrot.slane %v609, 4
        %v611 = vadd.f32 %v609, %v610
        %v612 = vrot.slane %v611, 2
        %v613 = vadd.f32 %v611, %v612
        %v614 = vrot.slane %v613, 1
        %v615 = vadd.f32 %v613, %v614
        %617 = vset.pattern.permute.xlu0 4
        %618 = vperm.xlu0 %617, %v220
        %v619 = vpop.permute.xlu0 %618
        %v621 = vadd.f32 %v615, %v619
        %v622 = vmax.f32 %v621, 0.0
        %623 = vst [vmem:[%s175] sm:$0x1] %v622
        %s624 = sand.u32 %s93, 1
        %s625 = scalar_lea.sflag [#allocation3], %s624
        %s626 = sand.u32 %s93, 1
        %s627 = scalar_lea.vmem [#allocation2], %s626
        // Predicated region
        $region33: #{tpu_custom_call.1} parent=31 // pred_check
          %p628 = pneg %p103
        $region34: #{tpu_custom_call.1} parent=31 // pred_check_branch
          %630 = sbr.rel (%p628) target = $region36
        $region35: #{tpu_custom_call.1} parent=31 // pred_region
          %s632 = ssub.s32 16, 16
          %633 = vsyncadd %s625, %s632
          %s634 = smul.addr %s17, 16
          %s635 = scalar_lea.hbm %s3, %s634
          %s637 = sshll.u32 %s627, 4
          %s638 = int_to_ptr.vmem [resolvable:$true] %s637
          %640 = dma.vmem_to_hbm [thread:$0]  %s638, 16, %s635, %s625
        $region36: #{tpu_custom_call.1} parent=31 // pred_fallthru
          _
      $region32: #{tpu_custom_call.1} parent=5 // pred_fallthru
        _
      %p641 = scmp.le.s32.totalorder 2, %s12
      // Predicated region
      $region37: #{tpu_custom_call.1} parent=5 // pred_check
        %p642 = pneg %p641
      $region38: #{tpu_custom_call.1} parent=5 // pred_check_branch
        %644 = sbr.rel (%p642) target = $region40
      $region39: #{tpu_custom_call.1} parent=5 // pred_region
        %s645 = ssub.s32 %s12, 2
        // Predicated region
        $region41: #{tpu_custom_call.1} parent=39 // pred_check
          %p646 = pneg %p109
        $region42: #{tpu_custom_call.1} parent=39 // pred_check_branch
          %648 = sbr.rel (%p646) target = $region44
        $region43: #{tpu_custom_call.1} parent=39 // pred_region
          %s649 = sand.u32 %s94, 1
          %s650 = scalar_lea.sflag [#allocation3], %s649
          %s651 = sand.u32 %s94, 1
          %s652 = scalar_lea.vmem [#allocation2], %s651
          %653 = dma.done %s650, 16
        $region44: #{tpu_custom_call.1} parent=39 // pred_fallthru
          _
      $region40: #{tpu_custom_call.1} parent=5 // pred_fallthru
        _
    $region6: #{tpu_custom_call.1} parent=1 // loop_footer
      %s16 = sadd.s32 1, %s12
    $region7: #{tpu_custom_call.1} parent=1 // loop_footer_branch
      %11 = sbr.rel target = $region3
    $region8: #{tpu_custom_call.1} parent=1 // loop_exit
      _
    %654 = vsyncpa [#allocation3], 1
    %s655 = scalar_lea.sflag [#allocation3], 1
    %656 = vsyncpa %s655, 1

</llo_original>
